<compile_context>
chip_gen: v7x
topology: tpu7x:2x2x1
jax: 0.10.0
libtpu: 0.0.40
codegen_flags: <defaults>
</compile_context>

<pallas_src>
import jax
import jax.numpy as jnp
from jax.experimental import pallas as pl
from jax.experimental.pallas import tpu as pltpu

BN_EPS = 1e-5


# ---------------------------------------------------------------------------
# Pass 1 kernels: first Linear + per-split batch-statistics accumulation.
# stats_ref is the resident (2, H) output block for this split:
#   row 0 = sum(h), row 1 = sum(h*h), accumulated across the inner grid axis.
# ---------------------------------------------------------------------------
def _accumulate_h_and_stats(h, h_ref, stats_ref):
    h_ref[...] = h.astype(h_ref.dtype)          # bf16 HBM roundtrip; stats f32
    stats_ref[0:1, :] += jnp.sum(h, axis=0, keepdims=True)
    stats_ref[1:2, :] += jnp.sum(h * h, axis=0, keepdims=True)


def linear_stats_fold_kernel(x_ref, w1_ref, b1_ref, h_ref, stats_ref):
    """Mean folded into the matmul: x is (bt, C_in*L), w1 is (C_in*L, H)/L."""
    @pl.when(pl.program_id(1) == 0)
    def _():
        stats_ref[...] = jnp.zeros_like(stats_ref)

    h = jnp.dot(x_ref[...], w1_ref[...],
                preferred_element_type=jnp.float32) + b1_ref[...]
    _accumulate_h_and_stats(h, h_ref, stats_ref)


def linear_stats_mean_kernel(x_ref, w1_ref, b1_ref, h_ref, stats_ref):
    """Large-H path: x kept (bt, C_in, L); mean over L in-kernel (XLU)."""
    @pl.when(pl.program_id(1) == 0)
    def _():
        stats_ref[...] = jnp.zeros_like(stats_ref)

    xm = jnp.mean(x_ref[...].astype(jnp.float32), axis=2)        # (bt, C_in)
    h = jnp.dot(xm.astype(w1_ref.dtype), w1_ref[...],
                preferred_element_type=jnp.float32) + b1_ref[...]
    _accumulate_h_and_stats(h, h_ref, stats_ref)


# ---------------------------------------------------------------------------
# Pass 2 kernel: BN affine (pre-folded to a, c) + ReLU + second Linear +
# lane-dense (128-padded) softmax.
# ---------------------------------------------------------------------------
def bn_relu_fc_softmax_kernel(h_ref, a_ref, c_ref, w2_ref, b2_ref,
                              feat_ref, out_ref):
    h = h_ref[...].astype(jnp.float32)
    feat = jnp.maximum(h * a_ref[...] + c_ref[...], 0.0)
    feat_ref[...] = feat

    logits = jnp.dot(feat.astype(w2_ref.dtype), w2_ref[...],
                     preferred_element_type=jnp.float32) + b2_ref[...]
    m = jnp.max(logits, axis=1, keepdims=True)
    e = jnp.exp(logits - m)                     # padded cols: exp(-1e30-m)==0
    # EUP approximate reciprocal: otherwise-idle slot, ~1e-3 level accuracy.
    out_ref[...] = e * pl.reciprocal(jnp.sum(e, axis=1, keepdims=True),
                                     approx=True)


# ---------------------------------------------------------------------------
# Wrapper helpers
# ---------------------------------------------------------------------------
def _vmem_budget_bytes():
    """Per-generation VMEM budget with headroom (v5e/v6e: 128 MiB, v7x: 64)."""
    try:
        cap = int(pltpu.get_tpu_info().vmem_capacity_bytes)
    except Exception:
        cap = 64 * 1024 * 1024                  # conservative: v7x physical
    return int(min(cap * 3 // 4, 100 * 1024 * 1024))


def _pick_bt(n, cap):
    """Largest multiple of 8 that divides n and is <= cap (n % 8 == 0)."""
    cap = max(8, min(int(cap), n))
    best, d = 8, 8
    while d <= cap:
        if n % d == 0:
            best = d
        d += 8
    return best


def _round_up(n, m):
    return ((n + m - 1) // m) * m


def prepare_params(w1, b1, gamma, beta, w2, b2, seq_len, *,
                   compute_dtype=jnp.float32, fold_mean=None):
    """One-time weight preprocessing (hoisted out of the per-call forward).

    At production sizes pass compute_dtype=jnp.bfloat16 on v6e/v7x (bf16 MXU,
    f32 accumulation).  All non-matmul epilogue math stays f32 (v5e VPU/EUP
    have no bf16).
    """
    C_in, H = w1.shape
    O = w2.shape[1]
    L = int(seq_len)
    if fold_mean is None:
        # Fold only while the Lx inflation of MXU FLOPs / w1 footprint is
        # cheaper than the in-kernel lane reduction (v5e hits the compute wall
        # first, v7x the 64 MiB VMEM wall second).
        fold_mean = H <= 256

    if fold_mean:
        w1p = (jnp.repeat(w1, L, axis=0) * (1.0 / L)).astype(compute_dtype)
    else:
        w1p = w1.astype(compute_dtype)

    # Lane-dense softmax output: pad O to a multiple of 128 with zero weight
    # columns and a -1e30 bias so exp() of the padded logits is exactly 0.
    O_pad = _round_up(O, 128)
    w2p = w2.astype(compute_dtype)
    b2p = jnp.reshape(b2, (1, O)).astype(jnp.float32)
    if O_pad != O:
        w2p = jnp.pad(w2p, ((0, 0), (0, O_pad - O)))
        b2p = jnp.pad(b2p, ((0, 0), (0, O_pad - O)), constant_values=-1e30)

    return dict(
        w1=w1p,
        b1=jnp.reshape(b1, (1, H)).astype(jnp.float32),
        gamma=jnp.reshape(gamma, (1, H)).astype(jnp.float32),
        beta=jnp.reshape(beta, (1, H)).astype(jnp.float32),
        w2=w2p, b2=b2p,
        fold_mean=bool(fold_mean), C_in=C_in, L=L, H=H, O=O, O_pad=O_pad,
        compute_dtype=compute_dtype,
    )


def mlp_forward(x, params, *, block_b=512, num_stat_splits=2,
                h_dtype=jnp.bfloat16):
    """x: (B, C_in, L).  Returns (feat=(B,H) f32, softmax=(B,O) f32).

    num_stat_splits=2 gives pass 1 an outer "parallel" grid axis with one
    partial-stats block per split, so both v7x TensorCores work on pass 1;
    harmless (plain sequential loop) on 1-TC v5e/v6e.
    """
    B, C_in, L = x.shape
    assert C_in == params["C_in"] and L == params["L"]
    H, O, O_pad = params["H"], params["O"], params["O_pad"]
    fold = params["fold_mean"]
    cdt = params["compute_dtype"]

    dsz = jnp.dtype(cdt).itemsize
    hsz = jnp.dtype(h_dtype).itemsize
    K = C_in * L

    # --- batch tiling: derive the tile cap from a per-generation VMEM budget
    # and pick a multiple-of-8 tile that divides the per-split batch.
    budget = _vmem_budget_bytes()
    resident = (K if fold else C_in) * H * dsz + H * O_pad * dsz + 64 * H * 4
    per_row = 2 * K * dsz + 4 * H * hsz + 2 * H * 4 + 2 * O_pad * 4
    bt_cap = max(8, (budget - resident) // max(per_row, 1))

    splits = max(1, int(num_stat_splits))
    if B % splits != 0 or (B // splits) % 8 != 0:
        splits = 1
    if B % 8 != 0:
        splits, bt = 1, B      # tiny / ragged batch: single full-dim tile
    else:
        bt = _pick_bt(B // splits, min(block_b, bt_cap))
    nb = (B // splits) // bt

    # ---------------- pass 1: Linear + batch-stat partial sums --------------
    # TODO(synk): for production K (= C_in*L when folded) add a K grid axis
    # with an f32 accumulator so the resident weight / x tiles keep fitting
    # v7x's 64 MiB VMEM; unnecessary at these sizes.
    out_shape1 = (jax.ShapeDtypeStruct((B, H), h_dtype),
                  jax.ShapeDtypeStruct((splits, 2, H), jnp.float32))
    out_specs1 = (pl.BlockSpec((bt, H), lambda c, i: (c * nb + i, 0)),
                  pl.BlockSpec((None, 2, H), lambda c, i: (c, 0, 0)))
    common1 = dict(
        out_shape=out_shape1,
        compiler_params=pltpu.CompilerParams(
            dimension_semantics=("parallel", "arbitrary"),
            vmem_limit_bytes=int(budget)),
    )
    if fold:
        x_in = x.reshape(B, K).astype(cdt)
        h, stats = pl.pallas_call(
            linear_stats_fold_kernel,
            grid_spec=pltpu.PrefetchScalarGridSpec(
                num_scalar_prefetch=0, grid=(splits, nb),
                in_specs=[
                    pl.BlockSpec((bt, K), lambda c, i: (c * nb + i, 0)),
                    pl.BlockSpec((K, H), lambda c, i: (0, 0)),
                    pl.BlockSpec((1, H), lambda c, i: (0, 0)),
                ],
                out_specs=out_specs1),
            **common1,
        )(x_in, params["w1"], params["b1"])
    else:
        x_in = x.astype(cdt)
        h, stats = pl.pallas_call(
            linear_stats_mean_kernel,
            grid_spec=pltpu.PrefetchScalarGridSpec(
                num_scalar_prefetch=0, grid=(splits, nb),
                in_specs=[
                    pl.BlockSpec((bt, C_in, L), lambda c, i: (c * nb + i, 0, 0)),
                    pl.BlockSpec((C_in, H), lambda c, i: (0, 0)),
                    pl.BlockSpec((1, H), lambda c, i: (0, 0)),
                ],
                out_specs=out_specs1),
            **common1,
        )(x_in, params["w1"], params["b1"])

    # --- combine per-split partial sums; fold BN affine to (a, c) ------------
    # Tiny (1,H) XLA ops between the two calls.
    s = jnp.sum(stats, axis=0)                         # (2, H)
    mu = s[0:1, :] * (1.0 / B)
    var = s[1:2, :] * (1.0 / B) - mu * mu              # one-pass E[h^2]-mu^2
    bn_a = params["gamma"] * jax.lax.rsqrt(var + BN_EPS)
    bn_c = params["beta"] - mu * bn_a

    # ---------------- pass 2: BN affine + ReLU + Linear + softmax ------------
    feat, out_pad = pl.pallas_call(
        bn_relu_fc_softmax_kernel,
        out_shape=(jax.ShapeDtypeStruct((B, H), jnp.float32),
                   jax.ShapeDtypeStruct((B, O_pad), jnp.float32)),
        grid_spec=pltpu.PrefetchScalarGridSpec(
            num_scalar_prefetch=0, grid=(B // bt,),
            in_specs=[
                pl.BlockSpec((bt, H), lambda i: (i, 0)),
                pl.BlockSpec((1, H), lambda i: (0, 0)),
                pl.BlockSpec((1, H), lambda i: (0, 0)),
                pl.BlockSpec((H, O_pad), lambda i: (0, 0)),
                pl.BlockSpec((1, O_pad), lambda i: (0, 0)),
            ],
            out_specs=(pl.BlockSpec((bt, H), lambda i: (i, 0)),
                       pl.BlockSpec((bt, O_pad), lambda i: (i, 0)))),
        compiler_params=pltpu.CompilerParams(
            dimension_semantics=("parallel",),
            vmem_limit_bytes=int(budget)),
    )(h, bn_a, bn_c, params["w2"], params["b2"])

    out = out_pad[:, :O] if O_pad != O else out_pad
    return feat, out


def reference(x, w1, b1, gamma, beta, w2, b2):
    xm = jnp.mean(x, axis=2)
    h = xm @ w1 + b1
    mu = jnp.mean(h, axis=0, keepdims=True)
    var = jnp.mean((h - mu) ** 2, axis=0, keepdims=True)
    hn = (h - mu) / jnp.sqrt(var + BN_EPS) * gamma + beta
    feat = jnp.maximum(hn, 0.0)
    logits = feat @ w2 + b2
    return feat, jax.nn.softmax(logits, axis=1)


if __name__ == "__main__":
    B, C_in, L = 64, 16, 16          # batch, in_channel, sequence length
    H, O = 32, 8                     # hid_channel, out_channel

    key = jax.random.PRNGKey(0)
    kx, k1, kb1, k2, kb2 = jax.random.split(key, 5)

    x = jax.random.normal(kx, (B, C_in, L), dtype=jnp.float32)
    w1 = jax.random.uniform(k1, (C_in, H), jnp.float32, -1.0, 1.0) / jnp.sqrt(C_in)
    b1 = jax.random.uniform(kb1, (H,), jnp.float32, -1.0, 1.0) / jnp.sqrt(C_in)
    w2 = jax.random.uniform(k2, (H, O), jnp.float32, -1.0, 1.0) / jnp.sqrt(H)
    b2 = jax.random.uniform(kb2, (O,), jnp.float32, -1.0, 1.0) / jnp.sqrt(H)
    gamma = jnp.ones((H,), jnp.float32)   # BatchNorm1d weight
    beta = jnp.zeros((H,), jnp.float32)   # BatchNorm1d bias

    ref_feat, ref_out = reference(x, w1, b1, gamma, beta, w2, b2)

    # (fold_mean, h_dtype, feat tol, out atol).  bf16 h-storage tolerances are
    # looser because BN rescales the bf16 rounding of h by ~1/std; softmax
    # additionally uses the EUP approximate reciprocal.
    configs = [
        (True,  jnp.bfloat16, 6e-2, 3e-2),   # default / recommended path
        (False, jnp.bfloat16, 6e-2, 3e-2),   # large-H (no-fold) path
        (True,  jnp.float32,  2e-3, 5e-3),   # f32 roundtrip, tight check
    ]
    for fold, h_dtype, ftol, otol in configs:
        params = prepare_params(w1, b1, gamma, beta, w2, b2, L, fold_mean=fold)
        feat, out = mlp_forward(x, params, block_b=16, num_stat_splits=2,
                                h_dtype=h_dtype)
        jax.block_until_ready((feat, out))
        assert feat.shape == (B, H) and out.shape == (B, O)
        assert jnp.allclose(feat, ref_feat, atol=ftol, rtol=ftol), \
            f"feat mismatch (fold={fold}, h_dtype={h_dtype})"
        assert jnp.allclose(out, ref_out, atol=otol, rtol=5e-2), \
            f"softmax mismatch (fold={fold}, h_dtype={h_dtype})"
        assert jnp.allclose(jnp.sum(out, axis=1), 1.0, atol=5e-3), \
            "rows not normalized"

    print("KERNEL_OK")
</pallas_src>

<mosaic_0001>
module attributes {stable_mosaic.version = 11 : i64} {
  func.func @linear_stats_fold_kernel(%arg0: i32, %arg1: i32, %arg2: memref<16x256xf32, #tpu.memory_space<vmem>>, %arg3: memref<256x32xf32, #tpu.memory_space<vmem>>, %arg4: memref<1x32xf32, #tpu.memory_space<vmem>>, %arg5: memref<16x32xbf16, #tpu.memory_space<vmem>>, %arg6: memref<1x2x32xf32, #tpu.memory_space<vmem>>) attributes {dimension_semantics = [#tpu.dimension_semantics<parallel>, #tpu.dimension_semantics<arbitrary>], iteration_bounds = array<i64: 2, 2>, scalar_prefetch = 0 : i64, scratch_operands = 0 : i64, tpu.core_type = #tpu.core_type<tc>, window_params = [{transform_indices = @transform_0, window_bounds = array<i64: 16, 256>}, {pipeline_mode = #tpu.pipeline_mode<synchronous>, transform_indices = @transform_1, window_bounds = array<i64: 256, 32>}, {pipeline_mode = #tpu.pipeline_mode<synchronous>, transform_indices = @transform_2, window_bounds = array<i64: 1, 32>}, {transform_indices = @transform_3, window_bounds = array<i64: 16, 32>}, {transform_indices = @transform_4, window_bounds = array<i64: 1, 2, 32>}]} {
    %c0_i32 = arith.constant 0 : i32
    %0 = arith.cmpi eq, %arg1, %c0_i32 : i32
    %1 = arith.extui %0 : i1 to i32
    %c0_i32_0 = arith.constant 0 : i32
    %2 = arith.cmpi ne, %1, %c0_i32_0 : i32
    scf.if %2 {
      %cst_21 = arith.constant 0.000000e+00 : f32
      %28 = vector.broadcast %cst_21 : f32 to vector<2x32xf32>
      %c0_22 = arith.constant 0 : index
      %c0_23 = arith.constant 0 : index
      %c0_24 = arith.constant 0 : index
      %29 = vector.load %arg6[%c0_22, %c0_23, %c0_24] : memref<1x2x32xf32, #tpu.memory_space<vmem>>, vector<1x2x32xf32>
      %30 = vector.shape_cast %29 : vector<1x2x32xf32> to vector<2x32xf32>
      %31 = vector.shape_cast %28 : vector<2x32xf32> to vector<1x2x32xf32>
      tpu.vector_store %arg6[%c0_22, %c0_23, %c0_24], %31 {strides = array<i32>} : memref<1x2x32xf32, #tpu.memory_space<vmem>>, vector<1x2x32xf32>,
    } else {
    }
    %c0 = arith.constant 0 : index
    %c0_1 = arith.constant 0 : index
    %3 = vector.load %arg2[%c0, %c0_1] : memref<16x256xf32, #tpu.memory_space<vmem>>, vector<16x256xf32>
    %c0_2 = arith.constant 0 : index
    %c0_3 = arith.constant 0 : index
    %4 = vector.load %arg3[%c0_2, %c0_3] : memref<256x32xf32, #tpu.memory_space<vmem>>, vector<256x32xf32>
    %cst = arith.constant dense<0.000000e+00> : vector<16x32xf32>
    %5 = tpu.matmul %3, %4, %cst {dimension_numbers = #tpu.dot_dimension_numbers<[1], [0], [0], [1], [0, 0, 1, 1], [], []>} : vector<16x256xf32>, vector<256x32xf32>, vector<16x32xf32> -> vector<16x32xf32>
    %c0_4 = arith.constant 0 : index
    %c0_5 = arith.constant 0 : index
    %6 = vector.load %arg4[%c0_4, %c0_5] : memref<1x32xf32, #tpu.memory_space<vmem>>, vector<1x32xf32>
    %7 = vector.broadcast %6 : vector<1x32xf32> to vector<16x32xf32>
    %8 = arith.addf %5, %7 : vector<16x32xf32>
    %9 = arith.truncf %8 : vector<16x32xf32> to vector<16x32xbf16>
    %c0_6 = arith.constant 0 : index
    %c0_7 = arith.constant 0 : index
    %10 = vector.load %arg5[%c0_6, %c0_7] : memref<16x32xbf16, #tpu.memory_space<vmem>>, vector<16x32xbf16>
    tpu.vector_store %arg5[%c0_6, %c0_7], %9 {strides = array<i32>} : memref<16x32xbf16, #tpu.memory_space<vmem>>, vector<16x32xbf16>,
    %c0_8 = arith.constant 0 : index
    %c0_9 = arith.constant 0 : index
    %c0_10 = arith.constant 0 : index
    %11 = vector.load %arg6[%c0_8, %c0_9, %c0_10] : memref<1x2x32xf32, #tpu.memory_space<vmem>>, vector<1x1x32xf32>
    %12 = vector.shape_cast %11 : vector<1x1x32xf32> to vector<1x32xf32>
    %cst_11 = arith.constant dense<0.000000e+00> : vector<32xf32>
    %13 = vector.multi_reduction <add>, %8, %cst_11 [0] : vector<16x32xf32> to vector<32xf32>
    %14 = vector.shape_cast %13 : vector<32xf32> to vector<1x32xf32>
    %15 = arith.addf %12, %14 : vector<1x32xf32>
    %c0_12 = arith.constant 0 : index
    %c0_13 = arith.constant 0 : index
    %c0_14 = arith.constant 0 : index
    %16 = vector.load %arg6[%c0_12, %c0_13, %c0_14] : memref<1x2x32xf32, #tpu.memory_space<vmem>>, vector<1x1x32xf32>
    %17 = vector.shape_cast %16 : vector<1x1x32xf32> to vector<1x32xf32>
    %18 = vector.shape_cast %15 : vector<1x32xf32> to vector<1x1x32xf32>
    tpu.vector_store %arg6[%c0_12, %c0_13, %c0_14], %18 {strides = array<i32>} : memref<1x2x32xf32, #tpu.memory_space<vmem>>, vector<1x1x32xf32>,
    %c0_15 = arith.constant 0 : index
    %c1 = arith.constant 1 : index
    %c0_16 = arith.constant 0 : index
    %19 = vector.load %arg6[%c0_15, %c1, %c0_16] : memref<1x2x32xf32, #tpu.memory_space<vmem>>, vector<1x1x32xf32>
    %20 = vector.shape_cast %19 : vector<1x1x32xf32> to vector<1x32xf32>
    %21 = arith.mulf %8, %8 : vector<16x32xf32>
    %cst_17 = arith.constant dense<0.000000e+00> : vector<32xf32>
    %22 = vector.multi_reduction <add>, %21, %cst_17 [0] : vector<16x32xf32> to vector<32xf32>
    %23 = vector.shape_cast %22 : vector<32xf32> to vector<1x32xf32>
    %24 = arith.addf %20, %23 : vector<1x32xf32>
    %c0_18 = arith.constant 0 : index
    %c1_19 = arith.constant 1 : index
    %c0_20 = arith.constant 0 : index
    %25 = vector.load %arg6[%c0_18, %c1_19, %c0_20] : memref<1x2x32xf32, #tpu.memory_space<vmem>>, vector<1x1x32xf32>
    %26 = vector.shape_cast %25 : vector<1x1x32xf32> to vector<1x32xf32>
    %27 = vector.shape_cast %24 : vector<1x32xf32> to vector<1x1x32xf32>
    tpu.vector_store %arg6[%c0_18, %c1_19, %c0_20], %27 {strides = array<i32>} : memref<1x2x32xf32, #tpu.memory_space<vmem>>, vector<1x1x32xf32>,
    return
  }
  func.func @transform_0(%arg0: i32, %arg1: i32) -> (i32, i32) {
    %c2_i32 = arith.constant 2 : i32
    %0 = arith.muli %arg0, %c2_i32 : i32
    %1 = arith.addi %0, %arg1 : i32
    %c0_i32 = arith.constant 0 : i32
    %c0_i32_0 = arith.constant 0 : i32
    return %1, %c0_i32 : i32, i32
  }
  func.func @transform_1(%arg0: i32, %arg1: i32) -> (i32, i32) {
    %c0_i32 = arith.constant 0 : i32
    %c0_i32_0 = arith.constant 0 : i32
    %c0_i32_1 = arith.constant 0 : i32
    return %c0_i32, %c0_i32_0 : i32, i32
  }
  func.func @transform_2(%arg0: i32, %arg1: i32) -> (i32, i32) {
    %c0_i32 = arith.constant 0 : i32
    %c0_i32_0 = arith.constant 0 : i32
    %c0_i32_1 = arith.constant 0 : i32
    return %c0_i32, %c0_i32_0 : i32, i32
  }
  func.func @transform_3(%arg0: i32, %arg1: i32) -> (i32, i32) {
    %c2_i32 = arith.constant 2 : i32
    %0 = arith.muli %arg0, %c2_i32 : i32
    %1 = arith.addi %0, %arg1 : i32
    %c0_i32 = arith.constant 0 : i32
    %c0_i32_0 = arith.constant 0 : i32
    return %1, %c0_i32 : i32, i32
  }
  func.func @transform_4(%arg0: i32, %arg1: i32) -> (i32, i32, i32) {
    %c0_i32 = arith.constant 0 : i32
    %c0_i32_0 = arith.constant 0 : i32
    %c0_i32_1 = arith.constant 0 : i32
    return %arg0, %c0_i32, %c0_i32_0 : i32, i32, i32
  }
}

</mosaic_0001>

<llo_original>
// kernel: tpu_custom_call.1
$region0: #{tpu_custom_call.1}
  #allocation0 [shape = 'u32[]', space=smem, size = 0x4, offset = 0x4, fixed_abs, tag = 'smem constant byte address 0x4 - core index']
  #allocation1 [shape = 'u32[144,128]{1,0:T(1,128)}', space=vmem, size = 0x12000, scoped, tag = 'internal scratch']
  %s0 = inlined_call_operand.vmem [shape: f32[64,256], index: 0, kind: input, shape index: {}]
  %s1 = inlined_call_operand.vmem [shape: f32[256,32], index: 1, kind: input, shape index: {}]
  %s2 = inlined_call_operand.vmem [shape: f32[1,32], index: 2, kind: input, shape index: {}]
  %s3 = inlined_call_operand.vmem [shape: bf16[64,32], index: 3, kind: output, shape index: {0}]
  %s4 = inlined_call_operand.hbm [shape: f32[2,2,32], index: 4, kind: output, shape index: {1}]
  %5 = xla_tuple %s3, %s4
  %s6 = sld [smem:[#allocation0]]
  $region57: #{tpu_custom_call.1} parent=0
    _
  %s8 = ssub.s32 1, %s6
  %s9 = scalar_select 0, %s8, %s6
  $region1: #{tpu_custom_call.1} parent=0
    #allocation2 [shape = 'u8[2048]{0}', space=vmem, size = 0x800, scoped, tag = 'output window, operand 1']
    #allocation3 [shape = 's32[2]{0}', space=sflag, size = 0x8, scoped, tag = 'scoped memory for tpu_custom_call.1']
    %10 = vsyncpa [#allocation3], 0
    %s11 = scalar_lea.sflag [#allocation3], 1
    %12 = vsyncpa %s11, 0
    loop: start=0, step=1, limit=6
    $region2: #{tpu_custom_call.1} parent=1 // loop_pre_header
      _
    $region3: #{tpu_custom_call.1} parent=1 // loop_header
      %s14 = sphi 0, %s18
      %p15 = scmp.ge.s32.totalorder %s14, 6
      %s21 = sphi 0, %s33
      %s22 = sphi 0, %s29
      %s23 = sphi 0, %s21
      %s24 = sphi 0, %s22
      %s25 = sphi 0, %s23
      %s26 = sphi 0, %s24
      %s40 = sphi 0, %s42
      %s43 = sphi 0, %s40
      %s44 = sphi 0, %s43
      %s60 = sphi 0, %s44
      %s64 = sphi 0, %s64
      %s66 = sphi 0, %s64
      %s67 = sphi 0, %s66
      %s81 = sphi 0, %s67
      %s85 = sphi 0, %s85
      %s87 = sphi 0, %s85
      %s88 = sphi 0, %s87
      %s102 = sphi 0, %s88
      %s112 = sphi 0, %s114
      %s115 = sphi 0, %s112
      %s116 = sphi 0, %s115
      %s132 = sphi 0, %s116
      %s138 = sphi 0, %s140
      %s141 = sphi 0, %s138
      %s142 = sphi 0, %s141
      %s158 = sphi 0, %s142
    $region4: #{tpu_custom_call.1} parent=1 // loop_header_branch
      %17 = sbr.rel (%p15) target = $region8
    $region5: #{tpu_custom_call.1} parent=1 // loop_body
      %s19 = ssub.s32 %s14, 1
      %s20 = ssub.s32 %s14, 2
      %s27 = sadd.s32 1, %s22
      %p28 = scmp.ge.s32.totalorder %s27, 2
      %s29 = scalar_select %p28, 0, %s27
      %s30 = sadd.s32 1, %s21
      %s31 = scalar_select %p28, %s30, %s21
      %p32 = scmp.ge.s32.totalorder %s31, 2
      %s33 = scalar_select %p32, 0, %s31
      %s34 = smul.u32 %s21, 2
      %s35 = sadd.s32 %s34, %s22
      %s36 = smul.u32 %s33, 2
      %s37 = sadd.s32 %s36, %s29
      %s38 = ssub.s32 %s35, %s37
      %p39 = scmp.eq.s32.totalorder %s38, 0
      %s41 = sadd.s32 %s40, 1
      %s42 = scalar_select %p39, %s40, %s41
      %p45 = pneg %p39
      %p46 = scmp.eq.s32.totalorder %s14, 3
      %p47 = por %p45, %p46
      %p48 = scmp.ne.s32.totalorder %s40, %s43
      %p49 = scmp.eq.s32.totalorder %s14, 0
      %p50 = por %p48, %p49
      %p51 = scmp.ne.s32.totalorder %s40, %s43
      %p52 = scmp.eq.s32.totalorder %s19, 3
      %p53 = por %p51, %p52
      %p54 = scmp.ne.s32.totalorder %s43, %s44
      %p55 = scmp.eq.s32.totalorder %s19, 0
      %p56 = por %p54, %p55
      %p57 = scmp.ne.s32.totalorder %s43, %s44
      %p58 = scmp.eq.s32.totalorder %s20, 3
      %p59 = por %p57, %p58
      %p61 = scmp.ne.s32.totalorder %s44, %s60
      %p62 = scmp.eq.s32.totalorder %s20, 0
      %p63 = por %p61, %p62
      %s65 = sadd.s32 %s64, 1
      %p68 = scmp.eq.s32.totalorder %s14, 3
      %p69 = scmp.ne.s32.totalorder %s64, %s66
      %p70 = scmp.eq.s32.totalorder %s14, 0
      %p71 = por %p69, %p70
      %p72 = scmp.ne.s32.totalorder %s64, %s66
      %p73 = scmp.eq.s32.totalorder %s19, 3
      %p74 = por %p72, %p73
      %p75 = scmp.ne.s32.totalorder %s66, %s67
      %p76 = scmp.eq.s32.totalorder %s19, 0
      %p77 = por %p75, %p76
      %p78 = scmp.ne.s32.totalorder %s66, %s67
      %p79 = scmp.eq.s32.totalorder %s20, 3
      %p80 = por %p78, %p79
      %p82 = scmp.ne.s32.totalorder %s67, %s81
      %p83 = scmp.eq.s32.totalorder %s20, 0
      %p84 = por %p82, %p83
      %s86 = sadd.s32 %s85, 1
      %p89 = scmp.eq.s32.totalorder %s14, 3
      %p90 = scmp.ne.s32.totalorder %s85, %s87
      %p91 = scmp.eq.s32.totalorder %s14, 0
      %p92 = por %p90, %p91
      %p93 = scmp.ne.s32.totalorder %s85, %s87
      %p94 = scmp.eq.s32.totalorder %s19, 3
      %p95 = por %p93, %p94
      %p96 = scmp.ne.s32.totalorder %s87, %s88
      %p97 = scmp.eq.s32.totalorder %s19, 0
      %p98 = por %p96, %p97
      %p99 = scmp.ne.s32.totalorder %s87, %s88
      %p100 = scmp.eq.s32.totalorder %s20, 3
      %p101 = por %p99, %p100
      %p103 = scmp.ne.s32.totalorder %s88, %s102
      %p104 = scmp.eq.s32.totalorder %s20, 0
      %p105 = por %p103, %p104
      %s106 = smul.u32 %s21, 2
      %s107 = sadd.s32 %s106, %s22
      %s108 = smul.u32 %s33, 2
      %s109 = sadd.s32 %s108, %s29
      %s110 = ssub.s32 %s107, %s109
      %p111 = scmp.eq.s32.totalorder %s110, 0
      %s113 = sadd.s32 %s112, 1
      %s114 = scalar_select %p111, %s112, %s113
      %p117 = pneg %p111
      %p118 = scmp.eq.s32.totalorder %s14, 3
      %p119 = por %p117, %p118
      %p120 = scmp.ne.s32.totalorder %s112, %s115
      %p121 = scmp.eq.s32.totalorder %s14, 0
      %p122 = por %p120, %p121
      %p123 = scmp.ne.s32.totalorder %s112, %s115
      %p124 = scmp.eq.s32.totalorder %s19, 3
      %p125 = por %p123, %p124
      %p126 = scmp.ne.s32.totalorder %s115, %s116
      %p127 = scmp.eq.s32.totalorder %s19, 0
      %p128 = por %p126, %p127
      %p129 = scmp.ne.s32.totalorder %s115, %s116
      %p130 = scmp.eq.s32.totalorder %s20, 3
      %p131 = por %p129, %p130
      %p133 = scmp.ne.s32.totalorder %s116, %s132
      %p134 = scmp.eq.s32.totalorder %s20, 0
      %p135 = por %p133, %p134
      %s136 = ssub.s32 %s21, %s33
      %p137 = scmp.eq.s32.totalorder %s136, 0
      %s139 = sadd.s32 %s138, 1
      %s140 = scalar_select %p137, %s138, %s139
      %p143 = pneg %p137
      %p144 = scmp.eq.s32.totalorder %s14, 3
      %p145 = por %p143, %p144
      %p146 = scmp.ne.s32.totalorder %s138, %s141
      %p147 = scmp.eq.s32.totalorder %s14, 0
      %p148 = por %p146, %p147
      %p149 = scmp.ne.s32.totalorder %s138, %s141
      %p150 = scmp.eq.s32.totalorder %s19, 3
      %p151 = por %p149, %p150
      %p152 = scmp.ne.s32.totalorder %s141, %s142
      %p153 = scmp.eq.s32.totalorder %s19, 0
      %p154 = por %p152, %p153
      %p155 = scmp.ne.s32.totalorder %s141, %s142
      %p156 = scmp.eq.s32.totalorder %s20, 3
      %p157 = por %p155, %p156
      %p159 = scmp.ne.s32.totalorder %s142, %s158
      %p160 = scmp.eq.s32.totalorder %s20, 0
      %p161 = por %p159, %p160
      %p162 = scmp.le.s32.totalorder 1, %s14
      %p163 = scmp.lt.s32.totalorder %s14, 5
      %p164 = pnand %p162, %p163
      %p165 = pneg %p164
      // Predicated region
      $region9: #{tpu_custom_call.1} parent=5 // pred_check
        _
      $region10: #{tpu_custom_call.1} parent=5 // pred_check_branch
        %167 = sbr.rel (%p164) target = $region12
      $region11: #{tpu_custom_call.1} parent=5 // pred_region
        %s168 = ssub.s32 %s14, 1
        // Predicated region
        $region13: #{tpu_custom_call.1} parent=11 // pred_check
          %p169 = pneg %p77
        $region14: #{tpu_custom_call.1} parent=11 // pred_check_branch
          %171 = sbr.rel (%p169) target = $region16
        $region15: #{tpu_custom_call.1} parent=11 // pred_region
          _
        $region16: #{tpu_custom_call.1} parent=11 // pred_fallthru
          _
        // Predicated region
        $region17: #{tpu_custom_call.1} parent=11 // pred_check
          %p172 = pneg %p98
        $region18: #{tpu_custom_call.1} parent=11 // pred_check_branch
          %174 = sbr.rel (%p172) target = $region20
        $region19: #{tpu_custom_call.1} parent=11 // pred_region
          _
        $region20: #{tpu_custom_call.1} parent=11 // pred_fallthru
          _
      $region12: #{tpu_custom_call.1} parent=5 // pred_fallthru
        _
      %p175 = scmp.lt.s32.totalorder %s14, 4
      // Predicated region
      $region21: #{tpu_custom_call.1} parent=5 // pred_check
        %p176 = pneg %p175
      $region22: #{tpu_custom_call.1} parent=5 // pred_check_branch
        %178 = sbr.rel (%p176) target = $region24
      $region23: #{tpu_custom_call.1} parent=5 // pred_region
        // Predicated region
        $region25: #{tpu_custom_call.1} parent=23 // pred_check
          %p179 = pneg %p50
        $region26: #{tpu_custom_call.1} parent=23 // pred_check_branch
          %181 = sbr.rel (%p179) target = $region28
        $region27: #{tpu_custom_call.1} parent=23 // pred_region
          %s182 = smul.u32 %s21, 2
          %s183 = sadd.s32 %s182, %s22
          %s184 = smul.u32 2, %s183
          %p185 = scmp.lt.s32.totalorder %s184, 7
          %s186 = scalar_select %p185, %s184, 7
          %s187 = smul.addr %s186, 2
          %s188 = smul.addr %s187, 8
          %s189 = scalar_lea.vmem %s0, %s188
          %s190 = smul.u32 %s21, 2
          %s191 = sadd.s32 %s190, %s22
          %s192 = smul.u32 2, %s191
        $region28: #{tpu_custom_call.1} parent=23 // pred_fallthru
          _
      $region24: #{tpu_custom_call.1} parent=5 // pred_fallthru
        _
      %p193 = scmp.le.s32.totalorder 1, %s14
      %p194 = scmp.lt.s32.totalorder %s14, 5
      %p195 = pnand %p193, %p194
      %p196 = pneg %p195
      // Predicated region
      $region29: #{tpu_custom_call.1} parent=5 // pred_check
        _
      $region30: #{tpu_custom_call.1} parent=5 // pred_check_branch
        %198 = sbr.rel (%p195) target = $region32
      $region31: #{tpu_custom_call.1} parent=5 // pred_region
        %s199 = ssub.s32 %s14, 1
        %s200 = smul.u32 %s23, 2
        %s201 = sadd.s32 %s200, %s24
        %s202 = smul.u32 2, %s201
        %p203 = scmp.lt.s32.totalorder %s202, 7
        %s204 = scalar_select %p203, %s202, 7
        %s205 = smul.addr %s204, 2
        %s206 = smul.addr %s205, 8
        %s207 = scalar_lea.vmem %s0, %s206
        %p208 = pneg %p56
        %p209 = pneg %p53
        %p210 = pneg %p77
        %p211 = pneg %p74
        %p212 = pneg %p98
        %p213 = pneg %p95
        %p214 = pneg %p128
        %p215 = pneg %p125
        %s216 = smul.u32 %s23, 2
        %s217 = sadd.s32 %s216, %s24
        %s218 = smul.u32 2, %s217
        %p219 = scmp.lt.s32.totalorder %s218, 7
        %s220 = scalar_select %p219, %s218, 7
        %s221 = smul.addr %s220, 4
        %s222 = scalar_lea.vmem %s3, %s221
        %p223 = pneg %p154
        %p224 = pneg %p151
        %s225 = sand.u32 %s141, 1
        %s226 = scalar_lea.sflag [#allocation3], %s225
        %s227 = sand.u32 %s141, 1
        %s228 = smul.addr %s227, 2
        %s229 = scalar_lea.vmem [#allocation2], %s228
        %s230 = smul.u32 %s23, 2
        %s231 = sadd.s32 %s230, %s24
        %s232 = smul.u32 2, %s231
        %p233 = scmp.lt.s32.totalorder %s232, 7
        %s234 = scalar_select %p233, %s232, 7
        %s235 = smul.addr %s234, 2
        %s236 = smul.addr %s235, 8
        %s237 = scalar_lea.vmem %s0, %s236
        %s238 = smul.u32 %s23, 2
        %s239 = sadd.s32 %s238, %s24
        %s240 = smul.u32 2, %s239
        %s241 = smul.u32 %s23, 2
        %s242 = sadd.s32 %s241, %s24
        %s243 = smul.u32 2, %s242
        %p244 = scmp.lt.s32.totalorder %s243, 7
        %s245 = scalar_select %p244, %s243, 7
        %s246 = smul.addr %s245, 4
        %s247 = scalar_lea.vmem %s3, %s246
        %s248 = smul.u32 %s23, 2
        %s249 = sadd.s32 %s248, %s24
        %s250 = smul.u32 2, %s249
        %p251 = scmp.eq.s32.totalorder %s24, 0
        // Predicated region
        $region33: #{tpu_custom_call.1} parent=31 // pred_check
          %p252 = pneg %p251
        $region34: #{tpu_custom_call.1} parent=31 // pred_check_branch
          %254 = sbr.rel (%p252) target = $region36
        $region35: #{tpu_custom_call.1} parent=31 // pred_region
          %vm255 = vcmask 254976
          %256 = vst.msk [vmem:[%s229] sm:$0x3] %vm255, 0.0
        $region36: #{tpu_custom_call.1} parent=31 // pred_fallthru
          _
        %v257 = vld [vmem:[%s237] sm:$0xff]
        %v258 = vld [vmem:[%s237 + $0x8] sm:$0xff]
        %v259 = vld [vmem:[%s237 + $0x10] sm:$0xff]
        %v260 = vld [vmem:[%s237 + $0x18] sm:$0xff]
        %v261 = vld [vmem:[%s1] sm:$0xff]
        %v262 = vld [vmem:[%s1 + $0x8] sm:$0xff]
        %v263 = vld [vmem:[%s1 + $0x10] sm:$0xff]
        %v264 = vld [vmem:[%s1 + $0x18] sm:$0xff]
        %v265 = vld [vmem:[%s1 + $0x20] sm:$0xff]
        %v266 = vld [vmem:[%s1 + $0x28] sm:$0xff]
        %v267 = vld [vmem:[%s1 + $0x30] sm:$0xff]
        %v268 = vld [vmem:[%s1 + $0x38] sm:$0xff]
        %v269 = vld [vmem:[%s1 + $0x40] sm:$0xff]
        %v270 = vld [vmem:[%s1 + $0x48] sm:$0xff]
        %v271 = vld [vmem:[%s1 + $0x50] sm:$0xff]
        %v272 = vld [vmem:[%s1 + $0x58] sm:$0xff]
        %v273 = vld [vmem:[%s1 + $0x60] sm:$0xff]
        %v274 = vld [vmem:[%s1 + $0x68] sm:$0xff]
        %v275 = vld [vmem:[%s1 + $0x70] sm:$0xff]
        %v276 = vld [vmem:[%s1 + $0x78] sm:$0xff]
        %v277 = vld [vmem:[%s1 + $0x80] sm:$0xff]
        %v278 = vld [vmem:[%s1 + $0x88] sm:$0xff]
        %v279 = vld [vmem:[%s1 + $0x90] sm:$0xff]
        %v280 = vld [vmem:[%s1 + $0x98] sm:$0xff]
        %v281 = vld [vmem:[%s1 + $0xa0] sm:$0xff]
        %v282 = vld [vmem:[%s1 + $0xa8] sm:$0xff]
        %v283 = vld [vmem:[%s1 + $0xb0] sm:$0xff]
        %v284 = vld [vmem:[%s1 + $0xb8] sm:$0xff]
        %v285 = vld [vmem:[%s1 + $0xc0] sm:$0xff]
        %v286 = vld [vmem:[%s1 + $0xc8] sm:$0xff]
        %v287 = vld [vmem:[%s1 + $0xd0] sm:$0xff]
        %v288 = vld [vmem:[%s1 + $0xd8] sm:$0xff]
        %v289 = vld [vmem:[%s1 + $0xe0] sm:$0xff]
        %v290 = vld [vmem:[%s1 + $0xe8] sm:$0xff]
        %v291 = vld [vmem:[%s1 + $0xf0] sm:$0xff]
        %v292 = vld [vmem:[%s1 + $0xf8] sm:$0xff]
        %v293 = vld [vmem:[%s2] sm:$0x1]
        %v295 = vlaneseq
        %v296 = vshrl.u32 %v295, 7
        %v297 = vsub.s32 0, %v296
        %v298 = vrot.slane %v293, %v297
        %300 = vmatprep.subr.mxu0 0.0
        %301 = vmatpush1.msra.mxu0 %v261
        %302 = vmatprep.subr.mxu0 0.0
        %303 = vmatpush1.msra.mxu0 %v262
        %304 = vmatprep.subr.mxu0 0.0
        %305 = vmatpush1.msra.mxu0 %v263
        %306 = vmatprep.subr.mxu0 0.0
        %307 = vmatpush1.msra.mxu0 %v264
        %308 = vmatprep.subr.mxu0 0.0
        %309 = vmatpush1.msra.mxu0 %v265
        %310 = vmatprep.subr.mxu0 0.0
        %311 = vmatpush1.msra.mxu0 %v266
        %312 = vmatprep.subr.mxu0 0.0
        %313 = vmatpush1.msra.mxu0 %v267
        %314 = vmatprep.subr.mxu0 0.0
        %315 = vmatpush1.msra.mxu0 %v268
        %316 = vmatprep.subr.mxu0 0.0
        %317 = vmatpush1.msra.mxu0 %v269
        %318 = vmatprep.subr.mxu0 0.0
        %319 = vmatpush1.msra.mxu0 %v270
        %320 = vmatprep.subr.mxu0 0.0
        %321 = vmatpush1.msra.mxu0 %v271
        %322 = vmatprep.subr.mxu0 0.0
        %323 = vmatpush1.msra.mxu0 %v272
        %324 = vmatprep.subr.mxu0 0.0
        %325 = vmatpush1.msra.mxu0 %v273
        %326 = vmatprep.subr.mxu0 0.0
        %327 = vmatpush1.msra.mxu0 %v274
        %328 = vmatprep.subr.mxu0 0.0
        %329 = vmatpush1.msra.mxu0 %v275
        %330 = vmatprep.subr.mxu0 0.0
        %331 = vmatpush1.msra.mxu0 %v276
        %332 = vmatprep.subr.mxu0 0.0
        %333 = vmatpush1.msra.mxu0 %v277
        %334 = vmatprep.subr.mxu0 0.0
        %335 = vmatpush1.msra.mxu0 %v278
        %336 = vmatprep.subr.mxu0 0.0
        %337 = vmatpush1.msra.mxu0 %v279
        %338 = vmatprep.subr.mxu0 0.0
        %339 = vmatpush1.msra.mxu0 %v280
        %340 = vmatprep.subr.mxu0 0.0
        %341 = vmatpush1.msra.mxu0 %v281
        %342 = vmatprep.subr.mxu0 0.0
        %343 = vmatpush1.msra.mxu0 %v282
        %344 = vmatprep.subr.mxu0 0.0
        %345 = vmatpush1.msra.mxu0 %v283
        %346 = vmatprep.subr.mxu0 0.0
        %347 = vmatpush1.msra.mxu0 %v284
        %348 = vmatprep.subr.mxu0 0.0
        %349 = vmatpush1.msra.mxu0 %v285
        %350 = vmatprep.subr.mxu0 0.0
        %351 = vmatpush1.msra.mxu0 %v286
        %352 = vmatprep.subr.mxu0 0.0
        %353 = vmatpush1.msra.mxu0 %v287
        %354 = vmatprep.subr.mxu0 0.0
        %355 = vmatpush1.msra.mxu0 %v288
        %356 = vmatprep.subr.mxu0 0.0
        %357 = vmatpush1.msra.mxu0 %v289
        %358 = vmatprep.subr.mxu0 0.0
        %359 = vmatpush1.msra.mxu0 %v290
        %360 = vmatprep.subr.mxu0 0.0
        %361 = vmatpush1.msra.mxu0 %v291
        %362 = vmatprep.subr.mxu0 0.0
        %363 = vmatpush1.msra.mxu0 %v292
        %364 = vmatprep.mubr.f32.mxu0 %v258
        %365 = vmatmul.mubr.f32.gmra.mrb[0].mxu0 %v257
        %v366 = vpop.f32.mrb[0].mxu0
        %v367 = vadd.f32 %v298, %v366
        %v368 = vpop.f32.mrb[0].mxu0
        %369 = vmatprep.mubr.f32.mxu0 %v260
        %370 = vmatmul.mubr.f32.gmra.mrb[0].mxu0 %v259
        %v371 = vpop.f32.mrb[0].mxu0
        %v372 = vadd.f32 %v298, %v371
        %v373 = vpop.f32.mrb[0].mxu0
        %374 = vdwg.mxu0
        %v375 = vpack.c.bf16 %v372, %v367
        %v377 = vunpack.c.l.b16 %v375
        %v378 = vunpack.c.h.b16 %v375
        %v379 = vpack.c.b16 %v377, %v377
        %v380 = vpack.c.b16 %v378, %v378
        %vm383 = vcmask 257024
        %384 = vst.msk [vmem:[%s247] sm:$0xf] %vm383, %v379
        %385 = vst.msk [vmem:[%s247 + $0x4] sm:$0xf] %vm383, %v380
        %v386 = vld [vmem:[%s229] sm:$0x1]
        %vm387 = vcmask 261120
        %v388 = vsel %vm387, %v367, 0.0
        %v389 = vsel %vm387, %v372, 0.0
        %v390 = vadd.f32 %v388, %v389
        %v391 = vrot.slane %v390, 4
        %v392 = vadd.f32 %v390, %v391
        %v393 = vrot.slane %v392, 2
        %v394 = vadd.f32 %v392, %v393
        %v395 = vrot.slane %v394, 1
        %v396 = vadd.f32 %v394, %v395
        %v397 = vadd.f32 %v386, %v396
        %vm398 = vcmask 253952
        %399 = vst.msk [vmem:[%s229] sm:$0x1] %vm398, %v397
        %v400 = vld [vmem:[%s229 + $0x1] sm:$0x1]
        %v401 = vmul.f32 %v367, %v367
        %v402 = vmul.f32 %v372, %v372
        %v403 = vsel %vm387, %v401, 0.0
        %v404 = vsel %vm387, %v402, 0.0
        %v405 = vadd.f32 %v403, %v404
        %v406 = vrot.slane %v405, 4
        %v407 = vadd.f32 %v405, %v406
        %v408 = vrot.slane %v407, 2
        %v409 = vadd.f32 %v407, %v408
        %v410 = vrot.slane %v409, 1
        %v411 = vadd.f32 %v409, %v410
        %v412 = vadd.f32 %v400, %v411
        %413 = vst.msk [vmem:[%s229 + $0x1] sm:$0x1] %vm398, %v412
        %s414 = smul.u32 %s23, 2
        %s415 = sadd.s32 %s414, %s24
        %s416 = smul.u32 2, %s415
        %p417 = scmp.lt.s32.totalorder %s416, 7
        %s418 = scalar_select %p417, %s416, 7
        %s419 = smul.addr %s418, 4
        %s420 = scalar_lea.vmem %s3, %s419
        %s421 = sand.u32 %s141, 1
        %s422 = scalar_lea.sflag [#allocation3], %s421
        %s423 = sand.u32 %s141, 1
        %s424 = smul.addr %s423, 2
        %s425 = scalar_lea.vmem [#allocation2], %s424
        // Predicated region
        $region37: #{tpu_custom_call.1} parent=31 // pred_check
          %p426 = pneg %p125
        $region38: #{tpu_custom_call.1} parent=31 // pred_check_branch
          %428 = sbr.rel (%p426) target = $region40
        $region39: #{tpu_custom_call.1} parent=31 // pred_region
          %s429 = smul.u32 %s23, 2
          %s430 = sadd.s32 %s429, %s24
          %s431 = smul.u32 2, %s430
        $region40: #{tpu_custom_call.1} parent=31 // pred_fallthru
          _
        // Predicated region
        $region41: #{tpu_custom_call.1} parent=31 // pred_check
          %p432 = pneg %p151
        $region42: #{tpu_custom_call.1} parent=31 // pred_check_branch
          %434 = sbr.rel (%p432) target = $region44
        $region43: #{tpu_custom_call.1} parent=31 // pred_region
          %s436 = ssub.s32 32, 32
          %437 = vsyncadd %s422, %s436
          %s438 = smul.addr %s23, 32
          %s439 = scalar_lea.hbm %s4, %s438
          %s441 = sshll.u32 %s425, 4
          %s442 = int_to_ptr.vmem [resolvable:$true] %s441
          %444 = dma.vmem_to_hbm [thread:$0]  %s442, 32, %s439, %s422
        $region44: #{tpu_custom_call.1} parent=31 // pred_fallthru
          _
      $region32: #{tpu_custom_call.1} parent=5 // pred_fallthru
        _
      %p445 = scmp.le.s32.totalorder 2, %s14
      // Predicated region
      $region45: #{tpu_custom_call.1} parent=5 // pred_check
        %p446 = pneg %p445
      $region46: #{tpu_custom_call.1} parent=5 // pred_check_branch
        %448 = sbr.rel (%p446) target = $region48
      $region47: #{tpu_custom_call.1} parent=5 // pred_region
        %s449 = ssub.s32 %s14, 2
        // Predicated region
        $region49: #{tpu_custom_call.1} parent=47 // pred_check
          %p450 = pneg %p131
        $region50: #{tpu_custom_call.1} parent=47 // pred_check_branch
          %452 = sbr.rel (%p450) target = $region52
        $region51: #{tpu_custom_call.1} parent=47 // pred_region
          %s453 = smul.u32 %s25, 2
          %s454 = sadd.s32 %s453, %s26
          %s455 = smul.u32 2, %s454
          %p456 = scmp.lt.s32.totalorder %s455, 7
          %s457 = scalar_select %p456, %s455, 7
          %s458 = smul.addr %s457, 4
          %s459 = scalar_lea.vmem %s3, %s458
        $region52: #{tpu_custom_call.1} parent=47 // pred_fallthru
          _
        // Predicated region
        $region53: #{tpu_custom_call.1} parent=47 // pred_check
          %p460 = pneg %p157
        $region54: #{tpu_custom_call.1} parent=47 // pred_check_branch
          %462 = sbr.rel (%p460) target = $region56
        $region55: #{tpu_custom_call.1} parent=47 // pred_region
          %s463 = sand.u32 %s142, 1
          %s464 = scalar_lea.sflag [#allocation3], %s463
          %s465 = sand.u32 %s142, 1
          %s466 = smul.addr %s465, 2
          %s467 = scalar_lea.vmem [#allocation2], %s466
          %468 = dma.done %s464, 32
        $region56: #{tpu_custom_call.1} parent=47 // pred_fallthru
          _
      $region48: #{tpu_custom_call.1} parent=5 // pred_fallthru
        _
    $region6: #{tpu_custom_call.1} parent=1 // loop_footer
      %s18 = sadd.s32 1, %s14
    $region7: #{tpu_custom_call.1} parent=1 // loop_footer_branch
      %13 = sbr.rel target = $region3
    $region8: #{tpu_custom_call.1} parent=1 // loop_exit
      _
    %469 = vsyncpa [#allocation3], 1
    %s470 = scalar_lea.sflag [#allocation3], 1
    %471 = vsyncpa %s470, 1

</llo_original>
